<compile_context>
chip_gen: v7x
topology: tpu7x:2x2x1
jax: 0.10.0
libtpu: 0.0.40
codegen_flags: <defaults>
</compile_context>

<pallas_src>
import jax
import jax.numpy as jnp
from jax.experimental import pallas as pl
from jax.experimental.pallas import tpu as pltpu


_LANES = 512                        # lane-dense last dim, multiple of 128
_MAX_TILE_BYTES = 4 * 1024 * 1024   # ~4 MiB per buffer (16 MiB resident, 2x in + 2x out)
_MIN_GRID_STEPS = 4                 # keep >=4 grid steps so both v7x TCs stream
_PALLAS_MIN_BYTES = 512 * 1024      # below this, plain XLA (fusion) wins
_VMEM_LIMIT_BYTES = 48 << 20        # safe on v5e/v6e (128 MiB phys) and v7x (64 MiB phys)


def _round_up(n: int, m: int) -> int:
    return ((n + m - 1) // m) * m


def _scale_kernel(scale_ref, x_ref, o_ref):
    # scale lives in SMEM (scalar prefetch); elementwise multiply on the VPU.
    o_ref[...] = x_ref[...] * scale_ref[0].astype(x_ref.dtype)


def scale_forward(x: jax.Array, scale, *, donate_input: bool = False) -> jax.Array:
    """Equivalent of Scale(scale)(x) for an arbitrary-shaped (e.g. NCHW) tensor."""
    orig_shape = x.shape
    dtype = x.dtype
    total = x.size
    itemsize = jnp.dtype(dtype).itemsize

    # PyTorch wrapped-scalar semantics: the scalar takes x's dtype.
    scale_cast = jnp.asarray(scale, dtype=dtype)

    # Small-input bypass: launch/pipeline overhead dwarfs byte movement, and
    # XLA fuses a scalar multiply into adjacent ops for free.
    if total == 0 or total * itemsize < _PALLAS_MIN_BYTES:
        return x * scale_cast

    cols = _LANES
    pad = (-total) % cols            # at most 511 elements, not a full HBM pass
    rows = (total + pad) // cols

    # Dtype-aware sublane multiple: 8 rows for 4-byte, 16 for 2-byte, 32 for 1-byte.
    sub = max(8, 32 // itemsize)
    tile_rows_cap = max(sub, (_MAX_TILE_BYTES // (cols * itemsize)) // sub * sub)
    # Cap so the grid keeps >= _MIN_GRID_STEPS steps (v7x megacore sharding).
    tile_rows = min(tile_rows_cap, _round_up(pl.cdiv(rows, _MIN_GRID_STEPS), sub))
    grid = (pl.cdiv(rows, tile_rows),)   # ragged final tile is masked by Pallas

    flat = x.reshape(-1)
    if pad:
        flat = jnp.pad(flat, (0, pad))
    x2d = flat.reshape(rows, cols)

    # Scalar parameter -> SMEM (no recompile when the value changes).
    scale_arr = jnp.asarray(scale, dtype=jnp.float32).reshape(1)

    extra_kwargs = {}
    if donate_input:
        # Only a win when the caller donates x end-to-end; otherwise XLA must
        # insert a defensive copy (a full extra HBM pass), so this is opt-in.
        extra_kwargs["input_output_aliases"] = {1: 0}

    out2d = pl.pallas_call(
        _scale_kernel,
        out_shape=jax.ShapeDtypeStruct((rows, cols), dtype),
        grid_spec=pltpu.PrefetchScalarGridSpec(
            num_scalar_prefetch=1,
            grid=grid,
            # index_maps receive the scalar-prefetch ref as a trailing arg.
            in_specs=[pl.BlockSpec((tile_rows, cols), lambda i, s: (i, 0))],
            out_specs=pl.BlockSpec((tile_rows, cols), lambda i, s: (i, 0)),
        ),
        compiler_params=pltpu.CompilerParams(
            dimension_semantics=("parallel",),
            vmem_limit_bytes=_VMEM_LIMIT_BYTES,
        ),
        **extra_kwargs,
    )(scale_arr, x2d)

    out_flat = out2d.reshape(-1)
    if pad:
        out_flat = out_flat[:total]
    return out_flat.reshape(orig_shape)


if __name__ == "__main__":
    key = jax.random.PRNGKey(0)
    k1, k2 = jax.random.split(key)
    scale = 0.125  # e.g. 1/sqrt(dim_head)

    # 1) Module-consistent small NCHW input -> takes the small-input bypass.
    x_small = jax.random.normal(k1, (2, 4, 16, 16), dtype=jnp.float32)
    y_small = jax.block_until_ready(scale_forward(x_small, scale))
    assert y_small.shape == x_small.shape and y_small.dtype == x_small.dtype
    assert jnp.allclose(y_small, x_small * scale, atol=1e-6, rtol=1e-6)

    # 2) Larger NCHW input that exercises the Pallas kernel: total is not a
    #    multiple of 512 (small lane pad) and the grid has a ragged final
    #    row tile (4 grid steps).
    x_big = jax.random.normal(k2, (2, 32, 65, 65), dtype=jnp.float32)
    y_big = jax.block_until_ready(scale_forward(x_big, scale))
    assert y_big.shape == x_big.shape and y_big.dtype == x_big.dtype
    assert jnp.allclose(y_big, x_big * scale, atol=1e-6, rtol=1e-6)

    print("KERNEL_OK")
</pallas_src>

<mosaic_0001>
module attributes {stable_mosaic.version = 11 : i64} {
  func.func @_scale_kernel(%arg0: i32, %arg1: memref<1xf32, #tpu.memory_space<smem>>, %arg2: memref<136x512xf32, #tpu.memory_space<vmem>>, %arg3: memref<136x512xf32, #tpu.memory_space<vmem>>) attributes {dimension_semantics = [#tpu.dimension_semantics<parallel>], iteration_bounds = array<i64: 4>, scalar_prefetch = 1 : i64, scratch_operands = 0 : i64, tpu.core_type = #tpu.core_type<tc>, window_params = [{transform_indices = @transform_0, window_bounds = array<i64: 136, 512>}, {transform_indices = @transform_1, window_bounds = array<i64: 136, 512>}]} {
    %c0 = arith.constant 0 : index
    %c0_0 = arith.constant 0 : index
    %0 = vector.load %arg2[%c0, %c0_0] : memref<136x512xf32, #tpu.memory_space<vmem>>, vector<136x512xf32>
    %c0_1 = arith.constant 0 : index
    %1 = memref.load %arg1[%c0_1] : memref<1xf32, #tpu.memory_space<smem>>
    %2 = vector.broadcast %1 : f32 to vector<136x512xf32>
    %3 = arith.mulf %0, %2 : vector<136x512xf32>
    %c0_2 = arith.constant 0 : index
    %c0_3 = arith.constant 0 : index
    %4 = vector.load %arg3[%c0_2, %c0_3] : memref<136x512xf32, #tpu.memory_space<vmem>>, vector<136x512xf32>
    tpu.vector_store %arg3[%c0_2, %c0_3], %3 {strides = array<i32>} : memref<136x512xf32, #tpu.memory_space<vmem>>, vector<136x512xf32>,
    return
  }
  func.func @transform_0(%arg0: i32, %arg1: memref<1xf32, #tpu.memory_space<smem>>) -> (i32, i32) {
    %c0_i32 = arith.constant 0 : i32
    %c0_i32_0 = arith.constant 0 : i32
    return %arg0, %c0_i32 : i32, i32
  }
  func.func @transform_1(%arg0: i32, %arg1: memref<1xf32, #tpu.memory_space<smem>>) -> (i32, i32) {
    %c0_i32 = arith.constant 0 : i32
    %c0_i32_0 = arith.constant 0 : i32
    return %arg0, %c0_i32 : i32, i32
  }
}

</mosaic_0001>

<llo_original>
// kernel: tpu_custom_call.1
$region0: #{tpu_custom_call.1}
  #allocation0 [shape = 'u32[]', space=smem, size = 0x4, offset = 0x4, fixed_abs, tag = 'smem constant byte address 0x4 - core index']
  #allocation1 [shape = 'u32[144,128]{1,0:T(1,128)}', space=vmem, size = 0x12000, scoped, tag = 'internal scratch']
  #allocation2 [shape = 's32[1]{0}', space=sflag, size = 0x4, scoped, tag = 'scoped memory for tpu_custom_call.1']
  #allocation3 [shape = 'f32[1]{0:T(128)S(6)}', space=smem, size = 0x200, scoped, tag = 'prefetched SMEM operand 0']
  %s0 = inlined_call_operand.<no memory space> [shape: f32[1], index: 0, kind: input, shape index: {}]
  %s1 = inlined_call_operand.hbm [shape: f32[529,512], index: 1, kind: input, shape index: {}]
  %s2 = inlined_call_operand.hbm [shape: f32[529,512], index: 2, kind: output, shape index: {}]
  %s3 = sld [smem:[#allocation0]]
  $region41: #{tpu_custom_call.1} parent=0
    _
  %s5 = ssub.s32 1, %s3
  %s6 = scalar_select 0, %s5, %s3
  %7 = sst [smem:[#allocation3]] %s0
  $region1: #{tpu_custom_call.1} parent=0
    #allocation4 [shape = 'u8[557056]{0}', space=vmem, size = 0x88000, scoped, tag = 'input window, operand 1']
    #allocation5 [shape = 's32[2]{0}', space=sflag, size = 0x8, scoped, tag = 'scoped memory for tpu_custom_call.1']
    #allocation6 [shape = 's32[2]{0}', space=sflag, size = 0x8, scoped, tag = 'scoped memory for tpu_custom_call.1']
    #allocation7 [shape = 'u8[557056]{0}', space=vmem, size = 0x88000, scoped, tag = 'output window, operand 0']
    %8 = vsyncpa [#allocation5], 0
    %s9 = scalar_lea.sflag [#allocation5], 1
    %10 = vsyncpa %s9, 0
    %11 = vsyncpa [#allocation6], 0
    %s12 = scalar_lea.sflag [#allocation6], 1
    %13 = vsyncpa %s12, 0
    loop: start=0, step=1, limit=6
    $region2: #{tpu_custom_call.1} parent=1 // loop_pre_header
      _
    $region3: #{tpu_custom_call.1} parent=1 // loop_header
      %s15 = sphi 0, %s19
      %p16 = scmp.ge.s32.totalorder %s15, 6
      %s25 = sphi 0, %s27
      %s28 = sphi 0, %s25
      %s29 = sphi 0, %s28
      %s45 = sphi 0, %s29
      %s51 = sphi 0, %s53
      %s54 = sphi 0, %s51
      %s55 = sphi 0, %s54
      %s71 = sphi 0, %s55
    $region4: #{tpu_custom_call.1} parent=1 // loop_header_branch
      %18 = sbr.rel (%p16) target = $region8
    $region5: #{tpu_custom_call.1} parent=1 // loop_body
      %s20 = ssub.s32 %s15, 1
      %s21 = ssub.s32 %s15, 2
      %s22 = sadd.s32 %s15, 1
      %s23 = ssub.s32 %s15, %s22
      %p24 = scmp.eq.s32.totalorder %s23, 0
      %s26 = sadd.s32 %s25, 1
      %s27 = scalar_select %p24, %s25, %s26
      %p30 = pneg %p24
      %p31 = scmp.eq.s32.totalorder %s15, 3
      %p32 = por %p30, %p31
      %p33 = scmp.ne.s32.totalorder %s25, %s28
      %p34 = scmp.eq.s32.totalorder %s15, 0
      %p35 = por %p33, %p34
      %p36 = scmp.ne.s32.totalorder %s25, %s28
      %p37 = scmp.eq.s32.totalorder %s20, 3
      %p38 = por %p36, %p37
      %p39 = scmp.ne.s32.totalorder %s28, %s29
      %p40 = scmp.eq.s32.totalorder %s20, 0
      %p41 = por %p39, %p40
      %p42 = scmp.ne.s32.totalorder %s28, %s29
      %p43 = scmp.eq.s32.totalorder %s21, 3
      %p44 = por %p42, %p43
      %p46 = scmp.ne.s32.totalorder %s29, %s45
      %p47 = scmp.eq.s32.totalorder %s21, 0
      %p48 = por %p46, %p47
      %s49 = ssub.s32 %s15, %s22
      %p50 = scmp.eq.s32.totalorder %s49, 0
      %s52 = sadd.s32 %s51, 1
      %s53 = scalar_select %p50, %s51, %s52
      %p56 = pneg %p50
      %p57 = scmp.eq.s32.totalorder %s15, 3
      %p58 = por %p56, %p57
      %p59 = scmp.ne.s32.totalorder %s51, %s54
      %p60 = scmp.eq.s32.totalorder %s15, 0
      %p61 = por %p59, %p60
      %p62 = scmp.ne.s32.totalorder %s51, %s54
      %p63 = scmp.eq.s32.totalorder %s20, 3
      %p64 = por %p62, %p63
      %p65 = scmp.ne.s32.totalorder %s54, %s55
      %p66 = scmp.eq.s32.totalorder %s20, 0
      %p67 = por %p65, %p66
      %p68 = scmp.ne.s32.totalorder %s54, %s55
      %p69 = scmp.eq.s32.totalorder %s21, 3
      %p70 = por %p68, %p69
      %p72 = scmp.ne.s32.totalorder %s55, %s71
      %p73 = scmp.eq.s32.totalorder %s21, 0
      %p74 = por %p72, %p73
      %p75 = scmp.le.s32.totalorder 1, %s15
      %p76 = scmp.lt.s32.totalorder %s15, 5
      %p77 = pnand %p75, %p76
      %p78 = pneg %p77
      // Predicated region
      $region9: #{tpu_custom_call.1} parent=5 // pred_check
        _
      $region10: #{tpu_custom_call.1} parent=5 // pred_check_branch
        %80 = sbr.rel (%p77) target = $region12
      $region11: #{tpu_custom_call.1} parent=5 // pred_region
        %s81 = ssub.s32 %s15, 1
      $region12: #{tpu_custom_call.1} parent=5 // pred_fallthru
        _
      %p82 = scmp.lt.s32.totalorder %s15, 4
      // Predicated region
      $region13: #{tpu_custom_call.1} parent=5 // pred_check
        %p83 = pneg %p82
      $region14: #{tpu_custom_call.1} parent=5 // pred_check_branch
        %85 = sbr.rel (%p83) target = $region16
      $region15: #{tpu_custom_call.1} parent=5 // pred_region
        // Predicated region
        $region17: #{tpu_custom_call.1} parent=15 // pred_check
          %p86 = pneg %p35
        $region18: #{tpu_custom_call.1} parent=15 // pred_check_branch
          %88 = sbr.rel (%p86) target = $region20
        $region19: #{tpu_custom_call.1} parent=15 // pred_region
          %s89 = sand.u32 %s25, 1
          %s90 = scalar_lea.sflag [#allocation5], %s89
          %s91 = sand.u32 %s25, 1
          %s92 = smul.addr %s91, 544
          %s93 = scalar_lea.vmem [#allocation4], %s92
          %s94 = smul.u32 17, %s15
          %s95 = ssub.s32 67, %s94
          %p96 = scmp.lt.s32.totalorder %s95, 17
          %s97 = scalar_select %p96, %s95, 17
          %s98 = smul.u32 128, %s97
          %s99 = smul.u32 %s98, 4
          %s101 = ssub.s32 8704, %s99
          %102 = vsyncadd %s90, %s101
          %p103 = scmp.ne.s32.totalorder 0, %s99
          %s104 = smul.addr %s94, 4
          %s105 = smul.addr %s104, 128
          %s106 = scalar_lea.hbm %s1, %s105
          %s107 = smul.u32 32, %s97
          %s108 = sshll.u32 %s93, 4
          %s109 = int_to_ptr.vmem [resolvable:$true] %s108
          %s110 = sshll.u32 %s107, 4
          %114 = dma.hbm_to_vmem [thread:$0]  (%p103), %s106, %s110, %s109, %s90, 512, 512, 32
        $region20: #{tpu_custom_call.1} parent=15 // pred_fallthru
          _
      $region16: #{tpu_custom_call.1} parent=5 // pred_fallthru
        _
      %p115 = scmp.le.s32.totalorder 1, %s15
      %p116 = scmp.lt.s32.totalorder %s15, 5
      %p117 = pnand %p115, %p116
      %p118 = pneg %p117
      // Predicated region
      $region21: #{tpu_custom_call.1} parent=5 // pred_check
        _
      $region22: #{tpu_custom_call.1} parent=5 // pred_check_branch
        %120 = sbr.rel (%p117) target = $region24
      $region23: #{tpu_custom_call.1} parent=5 // pred_region
        %s121 = ssub.s32 %s15, 1
        %s122 = sand.u32 %s28, 1
        %s123 = scalar_lea.sflag [#allocation5], %s122
        %s124 = sand.u32 %s28, 1
        %s125 = smul.addr %s124, 544
        %s126 = scalar_lea.vmem [#allocation4], %s125
        // Predicated region
        $region25: #{tpu_custom_call.1} parent=23 // pred_check
          %p127 = pneg %p41
        $region26: #{tpu_custom_call.1} parent=23 // pred_check_branch
          %129 = sbr.rel (%p127) target = $region28
        $region27: #{tpu_custom_call.1} parent=23 // pred_region
          %130 = dma.done %s123, 8704
        $region28: #{tpu_custom_call.1} parent=23 // pred_fallthru
          _
        %s131 = sand.u32 %s28, 1
        %s132 = scalar_lea.sflag [#allocation5], %s131
        %s133 = sand.u32 %s28, 1
        %s134 = smul.addr %s133, 544
        %s135 = scalar_lea.vmem [#allocation4], %s134
        %p136 = pneg %p41
        %p137 = pneg %p38
        %p138 = pneg %p67
        %p139 = pneg %p64
        %s140 = sand.u32 %s54, 1
        %s141 = scalar_lea.sflag [#allocation6], %s140
        %s142 = sand.u32 %s54, 1
        %s143 = smul.addr %s142, 544
        %s144 = scalar_lea.vmem [#allocation7], %s143
        %s145 = smul.u32 17, %s20
        %s146 = ssub.s32 67, %s145
        %p147 = scmp.lt.s32.totalorder %s146, 17
        %s148 = scalar_select %p147, %s146, 17
        %s149 = smul.u32 128, %s148
        %s150 = smul.u32 %s149, 4
        %s151 = smul.u32 17, %s20
        %s152 = ssub.s32 67, %s151
        %p153 = scmp.lt.s32.totalorder %s152, 17
        %s154 = scalar_select %p153, %s152, 17
        %s155 = smul.u32 128, %s154
        %s156 = smul.u32 %s155, 4
        %v157 = vld [vmem:[%s126] sm:$0xff]
        %v158 = vld [vmem:[%s126 + $0x8] sm:$0xff]
        %v159 = vld [vmem:[%s126 + $0x10] sm:$0xff]
        %v160 = vld [vmem:[%s126 + $0x18] sm:$0xff]
        %v161 = vld [vmem:[%s126 + $0x20] sm:$0xff]
        %v162 = vld [vmem:[%s126 + $0x28] sm:$0xff]
        %v163 = vld [vmem:[%s126 + $0x30] sm:$0xff]
        %v164 = vld [vmem:[%s126 + $0x38] sm:$0xff]
        %v165 = vld [vmem:[%s126 + $0x40] sm:$0xff]
        %v166 = vld [vmem:[%s126 + $0x48] sm:$0xff]
        %v167 = vld [vmem:[%s126 + $0x50] sm:$0xff]
        %v168 = vld [vmem:[%s126 + $0x58] sm:$0xff]
        %v169 = vld [vmem:[%s126 + $0x60] sm:$0xff]
        %v170 = vld [vmem:[%s126 + $0x68] sm:$0xff]
        %v171 = vld [vmem:[%s126 + $0x70] sm:$0xff]
        %v172 = vld [vmem:[%s126 + $0x78] sm:$0xff]
        %v173 = vld [vmem:[%s126 + $0x80] sm:$0xff]
        %v174 = vld [vmem:[%s126 + $0x88] sm:$0xff]
        %v175 = vld [vmem:[%s126 + $0x90] sm:$0xff]
        %v176 = vld [vmem:[%s126 + $0x98] sm:$0xff]
        %v177 = vld [vmem:[%s126 + $0xa0] sm:$0xff]
        %v178 = vld [vmem:[%s126 + $0xa8] sm:$0xff]
        %v179 = vld [vmem:[%s126 + $0xb0] sm:$0xff]
        %v180 = vld [vmem:[%s126 + $0xb8] sm:$0xff]
        %v181 = vld [vmem:[%s126 + $0xc0] sm:$0xff]
        %v182 = vld [vmem:[%s126 + $0xc8] sm:$0xff]
        %v183 = vld [vmem:[%s126 + $0xd0] sm:$0xff]
        %v184 = vld [vmem:[%s126 + $0xd8] sm:$0xff]
        %v185 = vld [vmem:[%s126 + $0xe0] sm:$0xff]
        %v186 = vld [vmem:[%s126 + $0xe8] sm:$0xff]
        %v187 = vld [vmem:[%s126 + $0xf0] sm:$0xff]
        %v188 = vld [vmem:[%s126 + $0xf8] sm:$0xff]
        %v189 = vld [vmem:[%s126 + $0x100] sm:$0xff]
        %v190 = vld [vmem:[%s126 + $0x108] sm:$0xff]
        %v191 = vld [vmem:[%s126 + $0x110] sm:$0xff]
        %v192 = vld [vmem:[%s126 + $0x118] sm:$0xff]
        %v193 = vld [vmem:[%s126 + $0x120] sm:$0xff]
        %v194 = vld [vmem:[%s126 + $0x128] sm:$0xff]
        %v195 = vld [vmem:[%s126 + $0x130] sm:$0xff]
        %v196 = vld [vmem:[%s126 + $0x138] sm:$0xff]
        %v197 = vld [vmem:[%s126 + $0x140] sm:$0xff]
        %v198 = vld [vmem:[%s126 + $0x148] sm:$0xff]
        %v199 = vld [vmem:[%s126 + $0x150] sm:$0xff]
        %v200 = vld [vmem:[%s126 + $0x158] sm:$0xff]
        %v201 = vld [vmem:[%s126 + $0x160] sm:$0xff]
        %v202 = vld [vmem:[%s126 + $0x168] sm:$0xff]
        %v203 = vld [vmem:[%s126 + $0x170] sm:$0xff]
        %v204 = vld [vmem:[%s126 + $0x178] sm:$0xff]
        %v205 = vld [vmem:[%s126 + $0x180] sm:$0xff]
        %v206 = vld [vmem:[%s126 + $0x188] sm:$0xff]
        %v207 = vld [vmem:[%s126 + $0x190] sm:$0xff]
        %v208 = vld [vmem:[%s126 + $0x198] sm:$0xff]
        %v209 = vld [vmem:[%s126 + $0x1a0] sm:$0xff]
        %v210 = vld [vmem:[%s126 + $0x1a8] sm:$0xff]
        %v211 = vld [vmem:[%s126 + $0x1b0] sm:$0xff]
        %v212 = vld [vmem:[%s126 + $0x1b8] sm:$0xff]
        %v213 = vld [vmem:[%s126 + $0x1c0] sm:$0xff]
        %v214 = vld [vmem:[%s126 + $0x1c8] sm:$0xff]
        %v215 = vld [vmem:[%s126 + $0x1d0] sm:$0xff]
        %v216 = vld [vmem:[%s126 + $0x1d8] sm:$0xff]
        %v217 = vld [vmem:[%s126 + $0x1e0] sm:$0xff]
        %v218 = vld [vmem:[%s126 + $0x1e8] sm:$0xff]
        %v219 = vld [vmem:[%s126 + $0x1f0] sm:$0xff]
        %v220 = vld [vmem:[%s126 + $0x1f8] sm:$0xff]
        %v221 = vld [vmem:[%s126 + $0x200] sm:$0xff]
        %v222 = vld [vmem:[%s126 + $0x208] sm:$0xff]
        %v223 = vld [vmem:[%s126 + $0x210] sm:$0xff]
        %v224 = vld [vmem:[%s126 + $0x218] sm:$0xff]
        %s225 = sld [smem:[#allocation3]]
        %v226 = vstv %s225
        %v227 = vmul.f32 %v157, %v226
        %v228 = vmul.f32 %v158, %v226
        %v229 = vmul.f32 %v159, %v226
        %v230 = vmul.f32 %v160, %v226
        %v231 = vmul.f32 %v161, %v226
        %v232 = vmul.f32 %v162, %v226
        %v233 = vmul.f32 %v163, %v226
        %v234 = vmul.f32 %v164, %v226
        %v235 = vmul.f32 %v165, %v226
        %v236 = vmul.f32 %v166, %v226
        %v237 = vmul.f32 %v167, %v226
        %v238 = vmul.f32 %v168, %v226
        %v239 = vmul.f32 %v169, %v226
        %v240 = vmul.f32 %v170, %v226
        %v241 = vmul.f32 %v171, %v226
        %v242 = vmul.f32 %v172, %v226
        %v243 = vmul.f32 %v173, %v226
        %v244 = vmul.f32 %v174, %v226
        %v245 = vmul.f32 %v175, %v226
        %v246 = vmul.f32 %v176, %v226
        %v247 = vmul.f32 %v177, %v226
        %v248 = vmul.f32 %v178, %v226
        %v249 = vmul.f32 %v179, %v226
        %v250 = vmul.f32 %v180, %v226
        %v251 = vmul.f32 %v181, %v226
        %v252 = vmul.f32 %v182, %v226
        %v253 = vmul.f32 %v183, %v226
        %v254 = vmul.f32 %v184, %v226
        %v255 = vmul.f32 %v185, %v226
        %v256 = vmul.f32 %v186, %v226
        %v257 = vmul.f32 %v187, %v226
        %v258 = vmul.f32 %v188, %v226
        %v259 = vmul.f32 %v189, %v226
        %v260 = vmul.f32 %v190, %v226
        %v261 = vmul.f32 %v191, %v226
        %v262 = vmul.f32 %v192, %v226
        %v263 = vmul.f32 %v193, %v226
        %v264 = vmul.f32 %v194, %v226
        %v265 = vmul.f32 %v195, %v226
        %v266 = vmul.f32 %v196, %v226
        %v267 = vmul.f32 %v197, %v226
        %v268 = vmul.f32 %v198, %v226
        %v269 = vmul.f32 %v199, %v226
        %v270 = vmul.f32 %v200, %v226
        %v271 = vmul.f32 %v201, %v226
        %v272 = vmul.f32 %v202, %v226
        %v273 = vmul.f32 %v203, %v226
        %v274 = vmul.f32 %v204, %v226
        %v275 = vmul.f32 %v205, %v226
        %v276 = vmul.f32 %v206, %v226
        %v277 = vmul.f32 %v207, %v226
        %v278 = vmul.f32 %v208, %v226
        %v279 = vmul.f32 %v209, %v226
        %v280 = vmul.f32 %v210, %v226
        %v281 = vmul.f32 %v211, %v226
        %v282 = vmul.f32 %v212, %v226
        %v283 = vmul.f32 %v213, %v226
        %v284 = vmul.f32 %v214, %v226
        %v285 = vmul.f32 %v215, %v226
        %v286 = vmul.f32 %v216, %v226
        %v287 = vmul.f32 %v217, %v226
        %v288 = vmul.f32 %v218, %v226
        %v289 = vmul.f32 %v219, %v226
        %v290 = vmul.f32 %v220, %v226
        %v291 = vmul.f32 %v221, %v226
        %v292 = vmul.f32 %v222, %v226
        %v293 = vmul.f32 %v223, %v226
        %v294 = vmul.f32 %v224, %v226
        %295 = vst [vmem:[%s144] sm:$0xff] %v227
        %296 = vst [vmem:[%s144 + $0x8] sm:$0xff] %v228
        %297 = vst [vmem:[%s144 + $0x10] sm:$0xff] %v229
        %298 = vst [vmem:[%s144 + $0x18] sm:$0xff] %v230
        %299 = vst [vmem:[%s144 + $0x20] sm:$0xff] %v231
        %300 = vst [vmem:[%s144 + $0x28] sm:$0xff] %v232
        %301 = vst [vmem:[%s144 + $0x30] sm:$0xff] %v233
        %302 = vst [vmem:[%s144 + $0x38] sm:$0xff] %v234
        %303 = vst [vmem:[%s144 + $0x40] sm:$0xff] %v235
        %304 = vst [vmem:[%s144 + $0x48] sm:$0xff] %v236
        %305 = vst [vmem:[%s144 + $0x50] sm:$0xff] %v237
        %306 = vst [vmem:[%s144 + $0x58] sm:$0xff] %v238
        %307 = vst [vmem:[%s144 + $0x60] sm:$0xff] %v239
        %308 = vst [vmem:[%s144 + $0x68] sm:$0xff] %v240
        %309 = vst [vmem:[%s144 + $0x70] sm:$0xff] %v241
        %310 = vst [vmem:[%s144 + $0x78] sm:$0xff] %v242
        %311 = vst [vmem:[%s144 + $0x80] sm:$0xff] %v243
        %312 = vst [vmem:[%s144 + $0x88] sm:$0xff] %v244
        %313 = vst [vmem:[%s144 + $0x90] sm:$0xff] %v245
        %314 = vst [vmem:[%s144 + $0x98] sm:$0xff] %v246
        %315 = vst [vmem:[%s144 + $0xa0] sm:$0xff] %v247
        %316 = vst [vmem:[%s144 + $0xa8] sm:$0xff] %v248
        %317 = vst [vmem:[%s144 + $0xb0] sm:$0xff] %v249
        %318 = vst [vmem:[%s144 + $0xb8] sm:$0xff] %v250
        %319 = vst [vmem:[%s144 + $0xc0] sm:$0xff] %v251
        %320 = vst [vmem:[%s144 + $0xc8] sm:$0xff] %v252
        %321 = vst [vmem:[%s144 + $0xd0] sm:$0xff] %v253
        %322 = vst [vmem:[%s144 + $0xd8] sm:$0xff] %v254
        %323 = vst [vmem:[%s144 + $0xe0] sm:$0xff] %v255
        %324 = vst [vmem:[%s144 + $0xe8] sm:$0xff] %v256
        %325 = vst [vmem:[%s144 + $0xf0] sm:$0xff] %v257
        %326 = vst [vmem:[%s144 + $0xf8] sm:$0xff] %v258
        %327 = vst [vmem:[%s144 + $0x100] sm:$0xff] %v259
        %328 = vst [vmem:[%s144 + $0x108] sm:$0xff] %v260
        %329 = vst [vmem:[%s144 + $0x110] sm:$0xff] %v261
        %330 = vst [vmem:[%s144 + $0x118] sm:$0xff] %v262
        %331 = vst [vmem:[%s144 + $0x120] sm:$0xff] %v263
        %332 = vst [vmem:[%s144 + $0x128] sm:$0xff] %v264
        %333 = vst [vmem:[%s144 + $0x130] sm:$0xff] %v265
        %334 = vst [vmem:[%s144 + $0x138] sm:$0xff] %v266
        %335 = vst [vmem:[%s144 + $0x140] sm:$0xff] %v267
        %336 = vst [vmem:[%s144 + $0x148] sm:$0xff] %v268
        %337 = vst [vmem:[%s144 + $0x150] sm:$0xff] %v269
        %338 = vst [vmem:[%s144 + $0x158] sm:$0xff] %v270
        %339 = vst [vmem:[%s144 + $0x160] sm:$0xff] %v271
        %340 = vst [vmem:[%s144 + $0x168] sm:$0xff] %v272
        %341 = vst [vmem:[%s144 + $0x170] sm:$0xff] %v273
        %342 = vst [vmem:[%s144 + $0x178] sm:$0xff] %v274
        %343 = vst [vmem:[%s144 + $0x180] sm:$0xff] %v275
        %344 = vst [vmem:[%s144 + $0x188] sm:$0xff] %v276
        %345 = vst [vmem:[%s144 + $0x190] sm:$0xff] %v277
        %346 = vst [vmem:[%s144 + $0x198] sm:$0xff] %v278
        %347 = vst [vmem:[%s144 + $0x1a0] sm:$0xff] %v279
        %348 = vst [vmem:[%s144 + $0x1a8] sm:$0xff] %v280
        %349 = vst [vmem:[%s144 + $0x1b0] sm:$0xff] %v281
        %350 = vst [vmem:[%s144 + $0x1b8] sm:$0xff] %v282
        %351 = vst [vmem:[%s144 + $0x1c0] sm:$0xff] %v283
        %352 = vst [vmem:[%s144 + $0x1c8] sm:$0xff] %v284
        %353 = vst [vmem:[%s144 + $0x1d0] sm:$0xff] %v285
        %354 = vst [vmem:[%s144 + $0x1d8] sm:$0xff] %v286
        %355 = vst [vmem:[%s144 + $0x1e0] sm:$0xff] %v287
        %356 = vst [vmem:[%s144 + $0x1e8] sm:$0xff] %v288
        %357 = vst [vmem:[%s144 + $0x1f0] sm:$0xff] %v289
        %358 = vst [vmem:[%s144 + $0x1f8] sm:$0xff] %v290
        %359 = vst [vmem:[%s144 + $0x200] sm:$0xff] %v291
        %360 = vst [vmem:[%s144 + $0x208] sm:$0xff] %v292
        %361 = vst [vmem:[%s144 + $0x210] sm:$0xff] %v293
        %362 = vst [vmem:[%s144 + $0x218] sm:$0xff] %v294
        %s363 = sand.u32 %s54, 1
        %s364 = scalar_lea.sflag [#allocation6], %s363
        %s365 = sand.u32 %s54, 1
        %s366 = smul.addr %s365, 544
        %s367 = scalar_lea.vmem [#allocation7], %s366
        // Predicated region
        $region29: #{tpu_custom_call.1} parent=23 // pred_check
          %p368 = pneg %p64
        $region30: #{tpu_custom_call.1} parent=23 // pred_check_branch
          %370 = sbr.rel (%p368) target = $region32
        $region31: #{tpu_custom_call.1} parent=23 // pred_region
          %s371 = smul.u32 17, %s20
          %s372 = ssub.s32 67, %s371
          %p373 = scmp.lt.s32.totalorder %s372, 17
          %s374 = scalar_select %p373, %s372, 17
          %s375 = smul.u32 128, %s374
          %s376 = smul.u32 %s375, 4
          %s378 = ssub.s32 8704, %s376
          %379 = vsyncadd %s364, %s378
          %p380 = scmp.ne.s32.totalorder 0, %s376
          %s381 = smul.addr %s371, 4
          %s382 = smul.addr %s381, 128
          %s383 = scalar_lea.hbm %s2, %s382
          %s384 = smul.u32 32, %s374
          %s385 = sshll.u32 %s367, 4
          %s386 = int_to_ptr.vmem [resolvable:$true] %s385
          %s387 = sshll.u32 %s384, 4
          %391 = dma.vmem_to_hbm [thread:$0]  (%p380), %s386, %s387, %s383, %s364, 512, 512, 32
        $region32: #{tpu_custom_call.1} parent=23 // pred_fallthru
          _
      $region24: #{tpu_custom_call.1} parent=5 // pred_fallthru
        _
      %p392 = scmp.le.s32.totalorder 2, %s15
      // Predicated region
      $region33: #{tpu_custom_call.1} parent=5 // pred_check
        %p393 = pneg %p392
      $region34: #{tpu_custom_call.1} parent=5 // pred_check_branch
        %395 = sbr.rel (%p393) target = $region36
      $region35: #{tpu_custom_call.1} parent=5 // pred_region
        %s396 = ssub.s32 %s15, 2
        // Predicated region
        $region37: #{tpu_custom_call.1} parent=35 // pred_check
          %p397 = pneg %p70
        $region38: #{tpu_custom_call.1} parent=35 // pred_check_branch
          %399 = sbr.rel (%p397) target = $region40
        $region39: #{tpu_custom_call.1} parent=35 // pred_region
          %s400 = sand.u32 %s55, 1
          %s401 = scalar_lea.sflag [#allocation6], %s400
          %s402 = sand.u32 %s55, 1
          %s403 = smul.addr %s402, 544
          %s404 = scalar_lea.vmem [#allocation7], %s403
          %405 = dma.done %s401, 8704
        $region40: #{tpu_custom_call.1} parent=35 // pred_fallthru
          _
      $region36: #{tpu_custom_call.1} parent=5 // pred_fallthru
        _
    $region6: #{tpu_custom_call.1} parent=1 // loop_footer
      %s19 = sadd.s32 1, %s15
    $region7: #{tpu_custom_call.1} parent=1 // loop_footer_branch
      %14 = sbr.rel target = $region3
    $region8: #{tpu_custom_call.1} parent=1 // loop_exit
      _
    %406 = vsyncpa [#allocation5], 1
    %s407 = scalar_lea.sflag [#allocation5], 1
    %408 = vsyncpa %s407, 1
    %409 = vsyncpa [#allocation6], 1
    %s410 = scalar_lea.sflag [#allocation6], 1
    %411 = vsyncpa %s410, 1

</llo_original>
